<compile_context>
chip_gen: v6e
topology: v6e:2x2x1
jax: 0.10.0
libtpu: 0.0.40
codegen_flags: <defaults>
</compile_context>

<pallas_src>
import jax
import jax.numpy as jnp
from jax.experimental import pallas as pl
from jax.experimental.pallas import tpu as pltpu


def _round_up(x, m):
    return (x + m - 1) // m * m


# ---------------------------------------------------------------------------
# Kernel
# ---------------------------------------------------------------------------
def _ground_combinator_kernel(g_ref, s_ref, w1g_ref, w1s_ref, b1_ref,
                              w2_ref, b2_ref, o_ref, h_ref):
    # g:  [tb, G]   (int32 or float)        w1_g: [G, Hpad]   (bf16)
    # s:  [tb, E]   (f32)                   w1_s: [E, Hpad]   (bf16)
    # b1: [1, Hpad] (f32)   w2: [Hpad, Epad] (bf16)   b2: [1, Epad] (f32)
    # o:  [tb, Epad] (f32)  h_ref: VMEM scratch [tb, Hpad] (f32)
    cdt = w1g_ref.dtype  # MXU compute dtype (bf16 by default)

    # In-kernel cast of `ground` (matches torch .float()), then to compute dtype.
    g = g_ref[...].astype(jnp.float32).astype(cdt)
    s = s_ref[...].astype(cdt)

    # Split-K first layer (replaces the concat), f32 accumulation,
    # bias + ReLU fused into the single scratch store.
    h_ref[...] = jnp.maximum(
        jnp.dot(g, w1g_ref[...], preferred_element_type=jnp.float32)
        + jnp.dot(s, w1s_ref[...], preferred_element_type=jnp.float32)
        + b1_ref[...],
        0.0,
    )

    # Second layer: lane-dense (Epad = multiple of 128) output store.
    o_ref[...] = (
        jnp.dot(h_ref[...].astype(cdt), w2_ref[...],
                preferred_element_type=jnp.float32)
        + b2_ref[...]
    ).astype(o_ref.dtype)


# ---------------------------------------------------------------------------
# Wrapper
# ---------------------------------------------------------------------------
def ground_combinator(ground, state, kernel_params, *, block_rows=512,
                      return_padded=False):
    """Pallas equivalent of GroundCombinator.forward(ground, state).

    ground: [B, ground_dim] (any int/float dtype -- cast happens in-kernel)
    state:  [B, embedding_dim] f32
    kernel_params: output of prepare_params() (split + lane-padded + bf16).
    """
    w1_g, w1_s, b1, w2, b2 = kernel_params
    batch, gdim = ground.shape
    edim = state.shape[1]
    hpad = w1_g.shape[1]
    epad = w2.shape[1]
    assert w1_g.shape[0] == gdim and w1_s.shape[0] == edim

    # Large row tiles when the batch is big (compute/DMA overlap, ~85% of HBM
    # roofline per the measured tiled data); a single full-array block otherwise.
    tile_b = batch if batch <= block_rows else block_rows
    grid = (pl.cdiv(batch, tile_b),)

    row_spec = lambda cols: pl.BlockSpec((tile_b, cols), lambda i: (i, 0))
    # Constant index_map -> weights/biases stay VMEM-resident across grid steps.
    const_spec = lambda arr: pl.BlockSpec(arr.shape, lambda i: (0, 0))

    out = pl.pallas_call(
        _ground_combinator_kernel,
        out_shape=jax.ShapeDtypeStruct((batch, epad), jnp.float32),
        grid=grid,
        in_specs=[
            row_spec(gdim),        # ground
            row_spec(edim),        # state
            const_spec(w1_g),
            const_spec(w1_s),
            const_spec(b1),
            const_spec(w2),
            const_spec(b2),
        ],
        out_specs=row_spec(epad),
        scratch_shapes=[pltpu.VMEM((tile_b, hpad), jnp.float32)],
        compiler_params=pltpu.CompilerParams(
            dimension_semantics=("parallel",)),
    )(ground, state, w1_g, w1_s, b1, w2, b2)

    if return_padded:
        return out            # columns >= edim are exact zeros (zero-padded weights)
    return out[:, :edim]      # logical [B, embedding_dim]


# ---------------------------------------------------------------------------
# Parameter construction
# ---------------------------------------------------------------------------
def init_params(key, ground_dim, embedding_dim, hidden_dim=20):
    """Logical parameters, stored [in, out] (transposed vs torch) so x @ W + b."""
    k1, k2, k3, k4 = jax.random.split(key, 4)
    in1 = ground_dim + embedding_dim
    bound1 = 1.0 / jnp.sqrt(in1)
    bound2 = 1.0 / jnp.sqrt(hidden_dim)
    w1 = jax.random.uniform(k1, (in1, hidden_dim), jnp.float32, -bound1, bound1)
    b1 = jax.random.uniform(k2, (hidden_dim,), jnp.float32, -bound1, bound1)
    w2 = jax.random.uniform(k3, (hidden_dim, embedding_dim), jnp.float32, -bound2, bound2)
    b2 = jax.random.uniform(k4, (embedding_dim,), jnp.float32, -bound2, bound2)
    return (w1, b1, w2, b2)


def prepare_params(params, ground_dim, weight_dtype=jnp.bfloat16):
    """Split w1 in the same [ground, state] row order as the original concat,
    zero-pad hidden/embedding dims to 128 lanes, cast weights to bf16."""
    w1, b1, w2, b2 = params
    hidden = w1.shape[1]
    emb = w2.shape[1]
    hpad = _round_up(hidden, 128)
    epad = _round_up(emb, 128)

    pad_cols = lambda a, n: jnp.pad(a, ((0, 0), (0, n - a.shape[1])))
    w1_g = pad_cols(w1[:ground_dim], hpad).astype(weight_dtype)
    w1_s = pad_cols(w1[ground_dim:], hpad).astype(weight_dtype)
    b1_p = jnp.pad(b1, (0, hpad - hidden)).reshape(1, hpad).astype(jnp.float32)
    w2_p = jnp.pad(w2, ((0, hpad - hidden), (0, epad - emb))).astype(weight_dtype)
    b2_p = jnp.pad(b2, (0, epad - emb)).reshape(1, epad).astype(jnp.float32)
    return (w1_g, w1_s, b1_p, w2_p, b2_p)


# ---------------------------------------------------------------------------
# References for correctness checks
# ---------------------------------------------------------------------------
def _reference_mirrored(ground, state, kernel_params):
    """Mirrors the kernel's exact dtypes (bf16 MXU inputs, f32 accumulation)."""
    w1_g, w1_s, b1, w2, b2 = kernel_params
    cdt = w1_g.dtype
    g = ground.astype(jnp.float32).astype(cdt)
    s = state.astype(cdt)
    h = jnp.maximum(
        jnp.dot(g, w1_g, preferred_element_type=jnp.float32)
        + jnp.dot(s, w1_s, preferred_element_type=jnp.float32)
        + b1, 0.0)
    out = jnp.dot(h.astype(cdt), w2, preferred_element_type=jnp.float32) + b2
    return out[:, :state.shape[1]]


def _reference_f32(ground, state, logical_params):
    """Torch-semantics f32 reference: relu(cat(g, s) @ W1 + b1) @ W2 + b2."""
    w1, b1, w2, b2 = logical_params
    x = jnp.concatenate([ground.astype(jnp.float32), state], axis=1)
    return jnp.maximum(x @ w1 + b1, 0.0) @ w2 + b2


# ---------------------------------------------------------------------------
if __name__ == "__main__":
    key = jax.random.PRNGKey(0)
    ground_dim, embedding_dim, hidden_dim = 8, 32, 20

    kg, ks, kp, kg2, ks2 = jax.random.split(key, 5)
    logical = init_params(kp, ground_dim, embedding_dim, hidden_dim)
    kparams = prepare_params(logical, ground_dim, weight_dtype=jnp.bfloat16)

    # Small per-iteration shape (batch = max_variables = 8), int32 ground to
    # exercise the fused in-kernel cast.
    b_small = 8
    ground_s = jax.random.randint(kg, (b_small, ground_dim), -3, 3, dtype=jnp.int32)
    state_s = jax.random.normal(ks, (b_small, embedding_dim), dtype=jnp.float32)
    out_s = ground_combinator(ground_s, state_s, kparams)
    jax.block_until_ready(out_s)

    # Batched shape exercising the row grid / parallel semantics (how the module
    # should be called in practice to amortize per-call overhead).
    b_big = 1024
    ground_b = jax.random.randint(kg2, (b_big, ground_dim), -3, 3, dtype=jnp.int32)
    state_b = jax.random.normal(ks2, (b_big, embedding_dim), dtype=jnp.float32)
    out_b = ground_combinator(ground_b, state_b, kparams, block_rows=512)
    jax.block_until_ready(out_b)

    for g, s, o in ((ground_s, state_s, out_s), (ground_b, state_b, out_b)):
        assert o.shape == (g.shape[0], embedding_dim)
        ref_m = _reference_mirrored(g, s, kparams)          # same precision path
        assert jnp.allclose(o, ref_m, atol=1e-3, rtol=1e-3)
        ref_f = _reference_f32(g, s, logical)               # f32 torch semantics
        assert jnp.allclose(o, ref_f, atol=0.15, rtol=0.1)  # bf16 rounding only

    print("KERNEL_OK")
</pallas_src>

<mosaic_0001>
module attributes {stable_mosaic.version = 11 : i64} {
  func.func @_ground_combinator_kernel(%arg0: i32, %arg1: memref<8x8xi32, #tpu.memory_space<vmem>>, %arg2: memref<8x32xf32, #tpu.memory_space<vmem>>, %arg3: memref<8x128xbf16, #tpu.memory_space<vmem>>, %arg4: memref<32x128xbf16, #tpu.memory_space<vmem>>, %arg5: memref<1x128xf32, #tpu.memory_space<vmem>>, %arg6: memref<128x128xbf16, #tpu.memory_space<vmem>>, %arg7: memref<1x128xf32, #tpu.memory_space<vmem>>, %arg8: memref<8x128xf32, #tpu.memory_space<vmem>>, %arg9: memref<8x128xf32, #tpu.memory_space<vmem>>) attributes {dimension_semantics = [#tpu.dimension_semantics<parallel>], iteration_bounds = array<i64: 1>, scalar_prefetch = 0 : i64, scratch_operands = 1 : i64, tpu.core_type = #tpu.core_type<tc>, window_params = [{transform_indices = @transform_0, window_bounds = array<i64: 8, 8>}, {transform_indices = @transform_1, window_bounds = array<i64: 8, 32>}, {pipeline_mode = #tpu.pipeline_mode<synchronous>, transform_indices = @transform_2, window_bounds = array<i64: 8, 128>}, {pipeline_mode = #tpu.pipeline_mode<synchronous>, transform_indices = @transform_3, window_bounds = array<i64: 32, 128>}, {pipeline_mode = #tpu.pipeline_mode<synchronous>, transform_indices = @transform_4, window_bounds = array<i64: 1, 128>}, {pipeline_mode = #tpu.pipeline_mode<synchronous>, transform_indices = @transform_5, window_bounds = array<i64: 128, 128>}, {pipeline_mode = #tpu.pipeline_mode<synchronous>, transform_indices = @transform_6, window_bounds = array<i64: 1, 128>}, {transform_indices = @transform_7, window_bounds = array<i64: 8, 128>}]} {
    %c0 = arith.constant 0 : index
    %c0_0 = arith.constant 0 : index
    %0 = vector.load %arg1[%c0, %c0_0] : memref<8x8xi32, #tpu.memory_space<vmem>>, vector<8x8xi32>
    %1 = arith.sitofp %0 : vector<8x8xi32> to vector<8x8xf32>
    %2 = arith.truncf %1 : vector<8x8xf32> to vector<8x8xbf16>
    %c0_1 = arith.constant 0 : index
    %c0_2 = arith.constant 0 : index
    %3 = vector.load %arg2[%c0_1, %c0_2] : memref<8x32xf32, #tpu.memory_space<vmem>>, vector<8x32xf32>
    %4 = arith.truncf %3 : vector<8x32xf32> to vector<8x32xbf16>
    %c0_3 = arith.constant 0 : index
    %c0_4 = arith.constant 0 : index
    %5 = vector.load %arg3[%c0_3, %c0_4] : memref<8x128xbf16, #tpu.memory_space<vmem>>, vector<8x128xbf16>
    %cst = arith.constant dense<0.000000e+00> : vector<8x128xf32>
    %6 = tpu.matmul %2, %5, %cst {dimension_numbers = #tpu.dot_dimension_numbers<[1], [0], [0], [1], [0, 0, 1, 1], [], []>} : vector<8x8xbf16>, vector<8x128xbf16>, vector<8x128xf32> -> vector<8x128xf32>
    %c0_5 = arith.constant 0 : index
    %c0_6 = arith.constant 0 : index
    %7 = vector.load %arg4[%c0_5, %c0_6] : memref<32x128xbf16, #tpu.memory_space<vmem>>, vector<32x128xbf16>
    %cst_7 = arith.constant dense<0.000000e+00> : vector<8x128xf32>
    %8 = tpu.matmul %4, %7, %cst_7 {dimension_numbers = #tpu.dot_dimension_numbers<[1], [0], [0], [1], [0, 0, 1, 1], [], []>} : vector<8x32xbf16>, vector<32x128xbf16>, vector<8x128xf32> -> vector<8x128xf32>
    %9 = arith.addf %6, %8 : vector<8x128xf32>
    %c0_8 = arith.constant 0 : index
    %c0_9 = arith.constant 0 : index
    %10 = vector.load %arg5[%c0_8, %c0_9] : memref<1x128xf32, #tpu.memory_space<vmem>>, vector<1x128xf32>
    %11 = vector.broadcast %10 : vector<1x128xf32> to vector<8x128xf32>
    %12 = arith.addf %9, %11 : vector<8x128xf32>
    %cst_10 = arith.constant 0.000000e+00 : f32
    %13 = vector.broadcast %cst_10 : f32 to vector<8x128xf32>
    %14 = arith.maximumf %12, %13 : vector<8x128xf32>
    %c0_11 = arith.constant 0 : index
    %c0_12 = arith.constant 0 : index
    %15 = vector.load %arg9[%c0_11, %c0_12] : memref<8x128xf32, #tpu.memory_space<vmem>>, vector<8x128xf32>
    tpu.vector_store %arg9[%c0_11, %c0_12], %14 {strides = array<i32>} : memref<8x128xf32, #tpu.memory_space<vmem>>, vector<8x128xf32>,
    %c0_13 = arith.constant 0 : index
    %c0_14 = arith.constant 0 : index
    %16 = vector.load %arg9[%c0_13, %c0_14] : memref<8x128xf32, #tpu.memory_space<vmem>>, vector<8x128xf32>
    %17 = arith.truncf %16 : vector<8x128xf32> to vector<8x128xbf16>
    %c0_15 = arith.constant 0 : index
    %c0_16 = arith.constant 0 : index
    %18 = vector.load %arg6[%c0_15, %c0_16] : memref<128x128xbf16, #tpu.memory_space<vmem>>, vector<128x128xbf16>
    %cst_17 = arith.constant dense<0.000000e+00> : vector<8x128xf32>
    %19 = tpu.matmul %17, %18, %cst_17 {dimension_numbers = #tpu.dot_dimension_numbers<[1], [0], [0], [1], [0, 0, 1, 1], [], []>} : vector<8x128xbf16>, vector<128x128xbf16>, vector<8x128xf32> -> vector<8x128xf32>
    %c0_18 = arith.constant 0 : index
    %c0_19 = arith.constant 0 : index
    %20 = vector.load %arg7[%c0_18, %c0_19] : memref<1x128xf32, #tpu.memory_space<vmem>>, vector<1x128xf32>
    %21 = vector.broadcast %20 : vector<1x128xf32> to vector<8x128xf32>
    %22 = arith.addf %19, %21 : vector<8x128xf32>
    %c0_20 = arith.constant 0 : index
    %c0_21 = arith.constant 0 : index
    %23 = vector.load %arg8[%c0_20, %c0_21] : memref<8x128xf32, #tpu.memory_space<vmem>>, vector<8x128xf32>
    tpu.vector_store %arg8[%c0_20, %c0_21], %22 {strides = array<i32>} : memref<8x128xf32, #tpu.memory_space<vmem>>, vector<8x128xf32>,
    return
  }
  func.func @transform_0(%arg0: i32) -> (i32, i32) {
    %c0_i32 = arith.constant 0 : i32
    %c0_i32_0 = arith.constant 0 : i32
    return %arg0, %c0_i32 : i32, i32
  }
  func.func @transform_1(%arg0: i32) -> (i32, i32) {
    %c0_i32 = arith.constant 0 : i32
    %c0_i32_0 = arith.constant 0 : i32
    return %arg0, %c0_i32 : i32, i32
  }
  func.func @transform_2(%arg0: i32) -> (i32, i32) {
    %c0_i32 = arith.constant 0 : i32
    %c0_i32_0 = arith.constant 0 : i32
    %c0_i32_1 = arith.constant 0 : i32
    return %c0_i32, %c0_i32_0 : i32, i32
  }
  func.func @transform_3(%arg0: i32) -> (i32, i32) {
    %c0_i32 = arith.constant 0 : i32
    %c0_i32_0 = arith.constant 0 : i32
    %c0_i32_1 = arith.constant 0 : i32
    return %c0_i32, %c0_i32_0 : i32, i32
  }
  func.func @transform_4(%arg0: i32) -> (i32, i32) {
    %c0_i32 = arith.constant 0 : i32
    %c0_i32_0 = arith.constant 0 : i32
    %c0_i32_1 = arith.constant 0 : i32
    return %c0_i32, %c0_i32_0 : i32, i32
  }
  func.func @transform_5(%arg0: i32) -> (i32, i32) {
    %c0_i32 = arith.constant 0 : i32
    %c0_i32_0 = arith.constant 0 : i32
    %c0_i32_1 = arith.constant 0 : i32
    return %c0_i32, %c0_i32_0 : i32, i32
  }
  func.func @transform_6(%arg0: i32) -> (i32, i32) {
    %c0_i32 = arith.constant 0 : i32
    %c0_i32_0 = arith.constant 0 : i32
    %c0_i32_1 = arith.constant 0 : i32
    return %c0_i32, %c0_i32_0 : i32, i32
  }
  func.func @transform_7(%arg0: i32) -> (i32, i32) {
    %c0_i32 = arith.constant 0 : i32
    %c0_i32_0 = arith.constant 0 : i32
    return %arg0, %c0_i32 : i32, i32
  }
}

</mosaic_0001>

<llo_original>
// kernel: tpu_custom_call.1
$region0: #{tpu_custom_call.1}
  #allocation0 [shape = 'u32[]', space=smem, size = 0x4, offset = 0x4, fixed_abs, tag = 'smem constant byte address 0x4 - core index']
  #allocation1 [shape = 'u32[144,128]{1,0:T(1,128)}', space=vmem, size = 0x12000, scoped, tag = 'internal scratch']
  #allocation2 [shape = 'f32[8,128]{1,0:T(8,128)}', space=vmem, size = 0x1000, scoped, tag = 'scratch operand']
  %s0 = inlined_call_operand.hbm [shape: s32[8,8], index: 0, kind: input, shape index: {}]
  %s1 = inlined_call_operand.hbm [shape: f32[8,32], index: 1, kind: input, shape index: {}]
  %s2 = inlined_call_operand.hbm [shape: bf16[8,128], index: 2, kind: input, shape index: {}]
  %s3 = inlined_call_operand.hbm [shape: bf16[32,128], index: 3, kind: input, shape index: {}]
  %s4 = inlined_call_operand.vmem [shape: f32[1,128], index: 4, kind: input, shape index: {}]
  %s5 = inlined_call_operand.hbm [shape: bf16[128,128], index: 5, kind: input, shape index: {}]
  %s6 = inlined_call_operand.vmem [shape: f32[1,128], index: 6, kind: input, shape index: {}]
  %s7 = inlined_call_operand.hbm [shape: f32[8,128], index: 7, kind: output, shape index: {}]
  %s8 = sld [smem:[#allocation0]]
  $region58: #{tpu_custom_call.1} parent=0
    _
  %s10 = ssub.s32 1, %s8
  %s11 = scalar_select 0, %s10, %s8
  $region1: #{tpu_custom_call.1} parent=0
    #allocation3 [shape = 'u8[4096]{0}', space=vmem, size = 0x1000, scoped, tag = 'input window, operand 0, single buffered']
    #allocation4 [shape = 's32[1]{0}', space=sflag, size = 0x4, scoped, tag = 'scoped memory for tpu_custom_call.1']
    #allocation5 [shape = 's32[1]{0}', space=sflag, size = 0x4, scoped, tag = 'scoped memory for tpu_custom_call.1']
    #allocation6 [shape = 'u8[4096]{0}', space=vmem, size = 0x1000, scoped, tag = 'input window, operand 1, single buffered']
    #allocation7 [shape = 's32[1]{0}', space=sflag, size = 0x4, scoped, tag = 'scoped memory for tpu_custom_call.1']
    #allocation8 [shape = 'u8[2048]{0}', space=vmem, size = 0x800, scoped, tag = 'input window, operand 2, single buffered']
    #allocation9 [shape = 'u8[8192]{0}', space=vmem, size = 0x2000, scoped, tag = 'input window, operand 3, single buffered']
    #allocation10 [shape = 's32[1]{0}', space=sflag, size = 0x4, scoped, tag = 'scoped memory for tpu_custom_call.1']
    #allocation11 [shape = 'u8[32768]{0}', space=vmem, size = 0x8000, scoped, tag = 'input window, operand 5, single buffered']
    #allocation12 [shape = 'u8[4096]{0}', space=vmem, size = 0x1000, scoped, tag = 'output window, operand 0, single buffered']
    %12 = vsyncpa [#allocation4], 0
    %13 = vsyncpa [#allocation7], 0
    %14 = vsyncpa [#allocation10], 0
    %15 = vsyncpa [#allocation5], 0
    // Predicated region
    $region2: #{tpu_custom_call.1} parent=1 // pred_check
      _
    $region3: #{tpu_custom_call.1} parent=1 // pred_check_branch
      %17 = sbr.rel (0) target = $region5
    $region4: #{tpu_custom_call.1} parent=1 // pred_region
      %s19 = ssub.s32 128, 128
      %20 = vsyncadd [#allocation4], %s19
      %s22 = sshll.u32 [#allocation3], 4
      %s23 = int_to_ptr.vmem [resolvable:$true] %s22
      %25 = dma.hbm_to_vmem [thread:$0]  %s0, 128, %s23, [#allocation4]
    $region5: #{tpu_custom_call.1} parent=1 // pred_fallthru
      _
    // Predicated region
    $region6: #{tpu_custom_call.1} parent=1 // pred_check
      _
    $region7: #{tpu_custom_call.1} parent=1 // pred_check_branch
      %27 = sbr.rel (0) target = $region9
    $region8: #{tpu_custom_call.1} parent=1 // pred_region
      %s29 = ssub.s32 128, 128
      %30 = vsyncadd [#allocation7], %s29
      %s32 = sshll.u32 [#allocation6], 4
      %s33 = int_to_ptr.vmem [resolvable:$true] %s32
      %35 = dma.hbm_to_vmem [thread:$0]  %s1, 128, %s33, [#allocation7]
    $region9: #{tpu_custom_call.1} parent=1 // pred_fallthru
      _
    // Predicated region
    $region10: #{tpu_custom_call.1} parent=1 // pred_check
      _
    $region11: #{tpu_custom_call.1} parent=1 // pred_check_branch
      %37 = sbr.rel (0) target = $region13
    $region12: #{tpu_custom_call.1} parent=1 // pred_region
      %s39 = ssub.s32 64, 64
      %40 = vsyncadd [#allocation7], %s39
      %s42 = sshll.u32 [#allocation8], 4
      %s43 = int_to_ptr.vmem [resolvable:$true] %s42
      %45 = dma.hbm_to_vmem [thread:$0]  %s2, 64, %s43, [#allocation7]
    $region13: #{tpu_custom_call.1} parent=1 // pred_fallthru
      _
    // Predicated region
    $region14: #{tpu_custom_call.1} parent=1 // pred_check
      _
    $region15: #{tpu_custom_call.1} parent=1 // pred_check_branch
      %47 = sbr.rel (0) target = $region17
    $region16: #{tpu_custom_call.1} parent=1 // pred_region
      %s49 = ssub.s32 256, 256
      %50 = vsyncadd [#allocation10], %s49
      %s51 = sshll.u32 [#allocation9], 4
      %s52 = int_to_ptr.vmem [resolvable:$true] %s51
      %57 = dma.hbm_to_vmem [thread:$0]  %s3, 256, %s52, [#allocation10], 64, 64, 4
    $region17: #{tpu_custom_call.1} parent=1 // pred_fallthru
      _
    // Predicated region
    $region18: #{tpu_custom_call.1} parent=1 // pred_check
      _
    $region19: #{tpu_custom_call.1} parent=1 // pred_check_branch
      %59 = sbr.rel (0) target = $region21
    $region20: #{tpu_custom_call.1} parent=1 // pred_region
      _
    $region21: #{tpu_custom_call.1} parent=1 // pred_fallthru
      _
    // Predicated region
    $region22: #{tpu_custom_call.1} parent=1 // pred_check
      _
    $region23: #{tpu_custom_call.1} parent=1 // pred_check_branch
      %61 = sbr.rel (0) target = $region25
    $region24: #{tpu_custom_call.1} parent=1 // pred_region
      %s63 = ssub.s32 1024, 1024
      %64 = vsyncadd [#allocation10], %s63
      %s65 = sshll.u32 [#allocation11], 4
      %s66 = int_to_ptr.vmem [resolvable:$true] %s65
      %71 = dma.hbm_to_vmem [thread:$0]  %s5, 1024, %s66, [#allocation10], 64, 64, 4
    $region25: #{tpu_custom_call.1} parent=1 // pred_fallthru
      _
    // Predicated region
    $region26: #{tpu_custom_call.1} parent=1 // pred_check
      _
    $region27: #{tpu_custom_call.1} parent=1 // pred_check_branch
      %73 = sbr.rel (0) target = $region29
    $region28: #{tpu_custom_call.1} parent=1 // pred_region
      _
    $region29: #{tpu_custom_call.1} parent=1 // pred_fallthru
      _
    // Predicated region
    $region30: #{tpu_custom_call.1} parent=1 // pred_check
      _
    $region31: #{tpu_custom_call.1} parent=1 // pred_check_branch
      %75 = sbr.rel (0) target = $region33
    $region32: #{tpu_custom_call.1} parent=1 // pred_region
      %76 = dma.done [#allocation4], 128
    $region33: #{tpu_custom_call.1} parent=1 // pred_fallthru
      _
    // Predicated region
    $region34: #{tpu_custom_call.1} parent=1 // pred_check
      _
    $region35: #{tpu_custom_call.1} parent=1 // pred_check_branch
      %78 = sbr.rel (0) target = $region37
    $region36: #{tpu_custom_call.1} parent=1 // pred_region
      %79 = dma.done [#allocation7], 128
    $region37: #{tpu_custom_call.1} parent=1 // pred_fallthru
      _
    // Predicated region
    $region38: #{tpu_custom_call.1} parent=1 // pred_check
      _
    $region39: #{tpu_custom_call.1} parent=1 // pred_check_branch
      %81 = sbr.rel (0) target = $region41
    $region40: #{tpu_custom_call.1} parent=1 // pred_region
      %82 = dma.done [#allocation7], 64
    $region41: #{tpu_custom_call.1} parent=1 // pred_fallthru
      _
    // Predicated region
    $region42: #{tpu_custom_call.1} parent=1 // pred_check
      _
    $region43: #{tpu_custom_call.1} parent=1 // pred_check_branch
      %84 = sbr.rel (0) target = $region45
    $region44: #{tpu_custom_call.1} parent=1 // pred_region
      %85 = dma.done [#allocation10], 256
    $region45: #{tpu_custom_call.1} parent=1 // pred_fallthru
      _
    // Predicated region
    $region46: #{tpu_custom_call.1} parent=1 // pred_check
      _
    $region47: #{tpu_custom_call.1} parent=1 // pred_check_branch
      %87 = sbr.rel (0) target = $region49
    $region48: #{tpu_custom_call.1} parent=1 // pred_region
      %88 = dma.done [#allocation10], 1024
    $region49: #{tpu_custom_call.1} parent=1 // pred_fallthru
      _
    %v90 = vld [vmem:[#allocation3] sm:$0xff]
    %v91 = vcvt.s32.f32 %v90
    %v92 = vpack.c.bf16 %v91, %v91
    %v93 = vld [vmem:[#allocation6] sm:$0xff]
    %v94 = vpack.c.bf16 %v93, %v93
    %v95 = vld [vmem:[#allocation8] sm:$0xf]
    %v96 = vld [vmem:[#allocation9] sm:$0xf]
    %v97 = vld [vmem:[#allocation9 + $0x4] sm:$0xf]
    %v98 = vld [vmem:[#allocation9 + $0x8] sm:$0xf]
    %v99 = vld [vmem:[#allocation9 + $0xc] sm:$0xf]
    %v104 = vunpack.c.l.b16 %v96
    %v105 = vunpack.c.l.b16 %v97
    %v106 = vunpack.c.l.b16 %v98
    %v107 = vunpack.c.l.b16 %v99
    %v108 = vpack.c.b16 %v105, %v104
    %v109 = vpack.c.b16 %v107, %v106
    %vm112 = vcmask 261120
    %v114 = vsel %vm112, %v94, 0
    %116 = vmatprep.subr.bf16.mxu0 0
    %117 = vmatpush1.bf16.msra.mxu0 0
    %118 = vmatprep.subr.bf16.mxu0 0
    %119 = vmatpush1.bf16.msra.mxu0 0
    %120 = vmatprep.subr.bf16.mxu0 0
    %121 = vmatpush1.bf16.msra.mxu0 0
    %122 = vmatprep.subr.bf16.mxu0 0
    %123 = vmatpush1.bf16.msra.mxu0 0
    %124 = vmatprep.subr.bf16.mxu0 0
    %125 = vmatpush1.bf16.msra.mxu0 0
    %126 = vmatprep.subr.bf16.mxu0 0
    %127 = vmatpush1.bf16.msra.mxu0 0
    %128 = vmatprep.subr.bf16.mxu0 0
    %129 = vmatpush1.bf16.msra.mxu0 %v109
    %130 = vmatprep.subr.bf16.mxu0 0
    %131 = vmatpush1.bf16.msra.mxu0 %v108
    %132 = vmatprep.subr.bf16.mxu0 0
    %133 = vmatpush2.bf16.msra.mxu0 0
    %134 = vmatprep.subr.bf16.mxu0 0
    %135 = vmatpush2.bf16.msra.mxu0 0
    %136 = vmatprep.subr.bf16.mxu0 0
    %137 = vmatpush2.bf16.msra.mxu0 0
    %138 = vmatprep.subr.bf16.mxu0 0
    %139 = vmatpush2.bf16.msra.mxu0 0
    %140 = vmatprep.subr.bf16.mxu0 0
    %141 = vmatpush2.bf16.msra.mxu0 0
    %142 = vmatprep.subr.bf16.mxu0 0
    %143 = vmatpush2.bf16.msra.mxu0 0
    %144 = vmatprep.subr.bf16.mxu0 0
    %145 = vmatpush2.bf16.msra.mxu0 0
    %146 = vmatprep.subr.bf16.mxu0 0
    %147 = vmatpush2.bf16.msra.mxu0 0
    %148 = vmatprep.mubr.bf16.mxu0 0
    %149 = vmatmul.mubr.bf16.gmra.mxu0 %v114
    %v150 = vpop.f32.mrf.mxu0
    %v151 = vadd.f32 0.0, %v150
    %v152 = vpop.f32.mrf.mxu0
    %v153 = vpop.f32.mrf.mxu0
    %v154 = vpop.f32.mrf.mxu0
    %155 = vdwg.mxu0
    %vm156 = vcmask 64512
    %v158 = vsel %vm156, %v92, 0
    %vm160 = vcmask 1043456
    %v162 = vsel %vm160, %v95, 0
    %164 = vmatprep.subr.bf16.mxu0 0
    %165 = vmatpush1.bf16.msra.mxu0 0
    %166 = vmatprep.subr.bf16.mxu0 0
    %167 = vmatpush1.bf16.msra.mxu0 0
    %168 = vmatprep.subr.bf16.mxu0 0
    %169 = vmatpush1.bf16.msra.mxu0 0
    %170 = vmatprep.subr.bf16.mxu0 0
    %171 = vmatpush1.bf16.msra.mxu0 0
    %172 = vmatprep.subr.bf16.mxu0 0
    %173 = vmatpush1.bf16.msra.mxu0 0
    %174 = vmatprep.subr.bf16.mxu0 0
    %175 = vmatpush1.bf16.msra.mxu0 0
    %176 = vmatprep.subr.bf16.mxu0 0
    %177 = vmatpush1.bf16.msra.mxu0 0
    %178 = vmatprep.subr.bf16.mxu0 0
    %179 = vmatpush1.bf16.msra.mxu0 %v162
    %180 = vmatprep.subr.bf16.mxu0 0
    %181 = vmatpush2.bf16.msra.mxu0 0
    %182 = vmatprep.subr.bf16.mxu0 0
    %183 = vmatpush2.bf16.msra.mxu0 0
    %184 = vmatprep.subr.bf16.mxu0 0
    %185 = vmatpush2.bf16.msra.mxu0 0
    %186 = vmatprep.subr.bf16.mxu0 0
    %187 = vmatpush2.bf16.msra.mxu0 0
    %188 = vmatprep.subr.bf16.mxu0 0
    %189 = vmatpush2.bf16.msra.mxu0 0
    %190 = vmatprep.subr.bf16.mxu0 0
    %191 = vmatpush2.bf16.msra.mxu0 0
    %192 = vmatprep.subr.bf16.mxu0 0
    %193 = vmatpush2.bf16.msra.mxu0 0
    %194 = vmatprep.subr.bf16.mxu0 0
    %195 = vmatpush2.bf16.msra.mxu0 0
    %196 = vmatprep.mubr.bf16.mxu0 0
    %197 = vmatmul.mubr.bf16.gmra.mxu0 %v158
    %v198 = vpop.f32.mrf.mxu0
    %v199 = vadd.f32 %v151, %v198
    %v200 = vpop.f32.mrf.mxu0
    %v201 = vpop.f32.mrf.mxu0
    %v202 = vpop.f32.mrf.mxu0
    %203 = vdwg.mxu0
    %v204 = vld [vmem:[%s4] sm:$0x1]
    %v206 = vlaneseq
    %v207 = vshrl.u32 %v206, 7
    %v208 = vsub.s32 0, %v207
    %v209 = vrot.slane %v204, %v208
    %v211 = vadd.f32 %v199, %v209
    %v212 = vmax.f32 %v211, 0.0
    %213 = vst [vmem:[#allocation2] sm:$0xff] %v212
    %v214 = vld [vmem:[#allocation2] sm:$0xff]
    %v215 = vpack.c.bf16 %v214, %v214
    %v216 = vld [vmem:[#allocation11] sm:$0xf]
    %v217 = vld [vmem:[#allocation11 + $0x4] sm:$0xf]
    %v218 = vld [vmem:[#allocation11 + $0x8] sm:$0xf]
    %v219 = vld [vmem:[#allocation11 + $0xc] sm:$0xf]
    %v220 = vld [vmem:[#allocation11 + $0x10] sm:$0xf]
    %v221 = vld [vmem:[#allocation11 + $0x14] sm:$0xf]
    %v222 = vld [vmem:[#allocation11 + $0x18] sm:$0xf]
    %v223 = vld [vmem:[#allocation11 + $0x1c] sm:$0xf]
    %v224 = vld [vmem:[#allocation11 + $0x20] sm:$0xf]
    %v225 = vld [vmem:[#allocation11 + $0x24] sm:$0xf]
    %v226 = vld [vmem:[#allocation11 + $0x28] sm:$0xf]
    %v227 = vld [vmem:[#allocation11 + $0x2c] sm:$0xf]
    %v228 = vld [vmem:[#allocation11 + $0x30] sm:$0xf]
    %v229 = vld [vmem:[#allocation11 + $0x34] sm:$0xf]
    %v230 = vld [vmem:[#allocation11 + $0x38] sm:$0xf]
    %v231 = vld [vmem:[#allocation11 + $0x3c] sm:$0xf]
    %v232 = vld [vmem:[%s6] sm:$0x1]
    %v234 = vlaneseq
    %v235 = vshrl.u32 %v234, 7
    %v236 = vsub.s32 0, %v235
    %v237 = vrot.slane %v232, %v236
    %v255 = vunpack.c.l.b16 %v216
    %v256 = vunpack.c.l.b16 %v217
    %v257 = vunpack.c.l.b16 %v218
    %v258 = vunpack.c.l.b16 %v219
    %v259 = vunpack.c.l.b16 %v220
    %v260 = vunpack.c.l.b16 %v221
    %v261 = vunpack.c.l.b16 %v222
    %v262 = vunpack.c.l.b16 %v223
    %v263 = vunpack.c.l.b16 %v224
    %v264 = vunpack.c.l.b16 %v225
    %v265 = vunpack.c.l.b16 %v226
    %v266 = vunpack.c.l.b16 %v227
    %v267 = vunpack.c.l.b16 %v228
    %v268 = vunpack.c.l.b16 %v229
    %v269 = vunpack.c.l.b16 %v230
    %v270 = vunpack.c.l.b16 %v231
    %v271 = vpack.c.b16 %v256, %v255
    %v272 = vpack.c.b16 %v258, %v257
    %v273 = vpack.c.b16 %v260, %v259
    %v274 = vpack.c.b16 %v262, %v261
    %v275 = vpack.c.b16 %v264, %v263
    %v276 = vpack.c.b16 %v266, %v265
    %v277 = vpack.c.b16 %v268, %v267
    %v278 = vpack.c.b16 %v270, %v269
    %287 = vmatprep.subr.bf16.mxu0 0
    %288 = vmatpush1.bf16.msra.mxu0 %v278
    %289 = vmatprep.subr.bf16.mxu0 0
    %290 = vmatpush1.bf16.msra.mxu0 %v277
    %291 = vmatprep.subr.bf16.mxu0 0
    %292 = vmatpush1.bf16.msra.mxu0 %v276
    %293 = vmatprep.subr.bf16.mxu0 0
    %294 = vmatpush1.bf16.msra.mxu0 %v275
    %295 = vmatprep.subr.bf16.mxu0 0
    %296 = vmatpush1.bf16.msra.mxu0 %v274
    %297 = vmatprep.subr.bf16.mxu0 0
    %298 = vmatpush1.bf16.msra.mxu0 %v273
    %299 = vmatprep.subr.bf16.mxu0 0
    %300 = vmatpush1.bf16.msra.mxu0 %v272
    %301 = vmatprep.subr.bf16.mxu0 0
    %302 = vmatpush1.bf16.msra.mxu0 %v271
    %303 = vmatprep.subr.bf16.mxu0 0
    %304 = vmatpush2.bf16.msra.mxu0 0
    %305 = vmatprep.subr.bf16.mxu0 0
    %306 = vmatpush2.bf16.msra.mxu0 0
    %307 = vmatprep.subr.bf16.mxu0 0
    %308 = vmatpush2.bf16.msra.mxu0 0
    %309 = vmatprep.subr.bf16.mxu0 0
    %310 = vmatpush2.bf16.msra.mxu0 0
    %311 = vmatprep.subr.bf16.mxu0 0
    %312 = vmatpush2.bf16.msra.mxu0 0
    %313 = vmatprep.subr.bf16.mxu0 0
    %314 = vmatpush2.bf16.msra.mxu0 0
    %315 = vmatprep.subr.bf16.mxu0 0
    %316 = vmatpush2.bf16.msra.mxu0 0
    %317 = vmatprep.subr.bf16.mxu0 0
    %318 = vmatpush2.bf16.msra.mxu0 0
    %319 = vmatprep.mubr.bf16.mxu0 0
    %320 = vmatmul.mubr.bf16.gmra.mxu0 %v215
    %v321 = vpop.f32.mrf.mxu0
    %v322 = vadd.f32 %v237, %v321
    %v323 = vpop.f32.mrf.mxu0
    %v324 = vpop.f32.mrf.mxu0
    %v325 = vpop.f32.mrf.mxu0
    %326 = vdwg.mxu0
    %327 = vst [vmem:[#allocation12] sm:$0xff] %v322
    // Predicated region
    $region50: #{tpu_custom_call.1} parent=1 // pred_check
      _
    $region51: #{tpu_custom_call.1} parent=1 // pred_check_branch
      %329 = sbr.rel (0) target = $region53
    $region52: #{tpu_custom_call.1} parent=1 // pred_region
      %s331 = ssub.s32 128, 128
      %332 = vsyncadd [#allocation5], %s331
      %s334 = sshll.u32 [#allocation12], 4
      %s335 = int_to_ptr.vmem [resolvable:$true] %s334
      %337 = dma.vmem_to_hbm [thread:$0]  %s335, 128, %s7, [#allocation5]
    $region53: #{tpu_custom_call.1} parent=1 // pred_fallthru
      _
    // Predicated region
    $region54: #{tpu_custom_call.1} parent=1 // pred_check
      _
    $region55: #{tpu_custom_call.1} parent=1 // pred_check_branch
      %339 = sbr.rel (0) target = $region57
    $region56: #{tpu_custom_call.1} parent=1 // pred_region
      %340 = dma.done [#allocation5], 128
    $region57: #{tpu_custom_call.1} parent=1 // pred_fallthru
      _
    %341 = vsyncpa [#allocation4], 1
    %342 = vsyncpa [#allocation7], 1
    %343 = vsyncpa [#allocation10], 1
    %344 = vsyncpa [#allocation5], 1

</llo_original>
